<compile_context>
chip_gen: v5e
topology: v5e:2x2
jax: 0.10.0
libtpu: 0.0.40
codegen_flags: <defaults>
</compile_context>

<pallas_src>
import functools

import jax
import jax.numpy as jnp
import numpy as np
from jax.experimental import pallas as pl
from jax.experimental.pallas import tpu as pltpu

EPS = 1e-10


def _whdr_kernel(nc_ref, x1_ref, y1_ref, x2_ref, y2_ref, dk_ref, w_ref,
                 img_ref, loss_ref, wsum_ref, *, H, W, TM, delta):
    b = pl.program_id(0)
    c = pl.program_id(1)

    nc = nc_ref[b]                 # valid comparison count for image b (SMEM)
    chunk_start = c * TM

    # Default: an all-padding chunk contributes nothing.
    loss_ref[...] = jnp.zeros_like(loss_ref)
    wsum_ref[...] = jnp.zeros_like(wsum_ref)

    @pl.when(chunk_start < nc)
    def _():
        img = img_ref[0]                                   # (H, W) f32

        x1 = x1_ref[...].reshape(1, TM)
        y1 = y1_ref[...].reshape(1, TM)
        x2 = x2_ref[...].reshape(1, TM)
        y2 = y2_ref[...].reshape(1, TM)
        dk = dk_ref[...].reshape(1, TM)
        wt = w_ref[...].reshape(1, TM)

        # Hoisted iotas shared by both gathers.
        w_iota = jax.lax.broadcasted_iota(jnp.int32, (W, TM), 0)   # (W, TM)
        h_iota = jax.lax.broadcasted_iota(jnp.int32, (H, TM), 0)   # (H, TM)

        def gather(x, y):
            # Column pick via one-hot MXU matmul, row pick via sublane mask.
            onehot_x = (w_iota == x).astype(jnp.float32)            # (W, TM)
            cols = jnp.dot(img, onehot_x,
                           preferred_element_type=jnp.float32)      # (H, TM)
            sel = jnp.where(h_iota == y, cols, 0.0)                 # (H, TM)
            return jnp.sum(sel, axis=0, keepdims=True)              # (1, TM)

        r1 = gather(x1, y1)
        r2 = gather(x2, y2)

        # Division form of the reference (valid for any sign of r); these are
        # (1, TM) vector divides on the otherwise-idle EUP.
        cond1 = r2 / (r1 + EPS) > 1.0 + delta
        cond2 = r1 / (r2 + EPS) > 1.0 + delta
        alg = jnp.where(cond1, 1, jnp.where(cond2, 2, 0))
        mismatch = (alg != dk).astype(jnp.float32)

        lane = jax.lax.broadcasted_iota(jnp.int32, (1, TM), 1)
        valid = ((lane + chunk_start) < nc).astype(jnp.float32)     # mask pad

        wv = wt * valid
        loss_ref[...] = jnp.full(loss_ref.shape, jnp.sum(wv * mismatch),
                                 loss_ref.dtype)
        wsum_ref[...] = jnp.full(wsum_ref.shape, jnp.sum(wv),
                                 wsum_ref.dtype)


def whdr_test_loss(v_input, comparisons, num_comparisons, delta=0.1, tm=256):
    N, C, H, W = v_input.shape
    assert C == 1
    M = comparisons.shape[1]
    img = v_input.reshape(N, H, W).astype(jnp.float32)

    # Pad the comparison axis to a multiple of the chunk size TM.
    m_pad = max(tm, ((M + tm - 1) // tm) * tm)
    nchunks = m_pad // tm
    pad = ((0, 0), (0, m_pad - M))

    def prep(a, dt):
        return jnp.pad(a.astype(dt), pad).reshape(N, 1, m_pad)

    x1 = prep(comparisons[..., 0], jnp.int32)
    y1 = prep(comparisons[..., 1], jnp.int32)
    x2 = prep(comparisons[..., 2], jnp.int32)
    y2 = prep(comparisons[..., 3], jnp.int32)
    dk = prep(comparisons[..., 4], jnp.int32)
    wt = prep(comparisons[..., 5], jnp.float32)
    nc = num_comparisons.astype(jnp.int32)

    kernel = functools.partial(_whdr_kernel, H=H, W=W, TM=tm, delta=float(delta))

    comp_spec = pl.BlockSpec((1, 1, tm), lambda b, c, nc_ref: (b, 0, c))
    out_spec = pl.BlockSpec((1, 1, 1, 1), lambda b, c, nc_ref: (b, c, 0, 0))

    loss_part, w_part = pl.pallas_call(
        kernel,
        out_shape=(jax.ShapeDtypeStruct((N, nchunks, 1, 1), jnp.float32),
                   jax.ShapeDtypeStruct((N, nchunks, 1, 1), jnp.float32)),
        grid_spec=pltpu.PrefetchScalarGridSpec(
            num_scalar_prefetch=1,
            grid=(N, nchunks),
            in_specs=[comp_spec, comp_spec, comp_spec, comp_spec, comp_spec,
                      comp_spec,
                      pl.BlockSpec((1, H, W), lambda b, c, nc_ref: (b, 0, 0))],
            out_specs=(out_spec, out_spec),
        ),
        compiler_params=pltpu.CompilerParams(
            dimension_semantics=("parallel", "parallel"),
        ),
    )(nc, x1, y1, x2, y2, dk, wt, img)

    loss_sum = jnp.sum(loss_part.reshape(N, nchunks), axis=1)
    w_sum = jnp.sum(w_part.reshape(N, nchunks), axis=1)
    # Guard the numComparisons == 0 degenerate case (PyTorch would give 0/0);
    # identical to the reference whenever total weight > 0.
    per_image = jnp.where(w_sum > 0.0, loss_sum / w_sum, 0.0)
    return (jnp.sum(per_image) / float(N)).reshape(1)


def _reference_whdr(v, comps, ncomps, delta=0.1):
    """Pure-numpy replica of the PyTorch forward for verification."""
    eps = 1e-10
    N = v.shape[0]
    total = 0.0
    for n in range(N):
        loss = 0.0
        total_weight = 0.0
        for i in range(int(ncomps[n])):
            x1, y1, x2, y2, darker, w = comps[n, i]
            r1 = v[n, 0, int(y1), int(x1)]
            r2 = v[n, 0, int(y2), int(x2)]
            total_weight += w
            if r2 / (r1 + eps) > 1.0 + delta:
                alg = 1
            elif r1 / (r2 + eps) > 1.0 + delta:
                alg = 2
            else:
                alg = 0
            if alg != int(darker):
                loss += w
        total += loss / total_weight
    return total / N


if __name__ == "__main__":
    key = jax.random.PRNGKey(0)
    k1, k2, k3, k4 = jax.random.split(key, 4)

    N, H, W, M = 2, 16, 16, 8
    v_input = jax.random.uniform(k1, (N, 1, H, W), jnp.float32, 0.05, 1.0)
    xy = jax.random.randint(k2, (N, M, 4), 0, 16)
    darker = jax.random.randint(k3, (N, M, 1), 0, 3)
    weight = jax.random.uniform(k4, (N, M, 1), jnp.float32, 0.1, 1.0)
    comparisons = jnp.concatenate(
        [xy.astype(jnp.float32), darker.astype(jnp.float32), weight], axis=-1
    )
    num_comparisons = jnp.array([8, 5], dtype=jnp.int32)

    out = whdr_test_loss(v_input, comparisons, num_comparisons, delta=0.1)
    out = jax.block_until_ready(out)

    ref = _reference_whdr(
        np.asarray(v_input), np.asarray(comparisons), np.asarray(num_comparisons)
    )
    np.testing.assert_allclose(np.asarray(out)[0], ref, rtol=1e-5, atol=1e-6)

    print("KERNEL_OK")
</pallas_src>

<mosaic_0001>
module attributes {stable_mosaic.version = 11 : i64} {
  func.func @_whdr_kernel(%arg0: i32, %arg1: i32, %arg2: memref<2xi32, #tpu.memory_space<smem>>, %arg3: memref<1x1x256xi32, #tpu.memory_space<vmem>>, %arg4: memref<1x1x256xi32, #tpu.memory_space<vmem>>, %arg5: memref<1x1x256xi32, #tpu.memory_space<vmem>>, %arg6: memref<1x1x256xi32, #tpu.memory_space<vmem>>, %arg7: memref<1x1x256xi32, #tpu.memory_space<vmem>>, %arg8: memref<1x1x256xf32, #tpu.memory_space<vmem>>, %arg9: memref<1x16x16xf32, #tpu.memory_space<vmem>>, %arg10: memref<1x1x1x1xf32, #tpu.memory_space<vmem>>, %arg11: memref<1x1x1x1xf32, #tpu.memory_space<vmem>>) attributes {dimension_semantics = [#tpu.dimension_semantics<parallel>, #tpu.dimension_semantics<parallel>], iteration_bounds = array<i64: 2, 1>, scalar_prefetch = 1 : i64, scratch_operands = 0 : i64, tpu.core_type = #tpu.core_type<tc>, window_params = [{transform_indices = @transform_0, window_bounds = array<i64: 1, 1, 256>}, {transform_indices = @transform_1, window_bounds = array<i64: 1, 1, 256>}, {transform_indices = @transform_2, window_bounds = array<i64: 1, 1, 256>}, {transform_indices = @transform_3, window_bounds = array<i64: 1, 1, 256>}, {transform_indices = @transform_4, window_bounds = array<i64: 1, 1, 256>}, {transform_indices = @transform_5, window_bounds = array<i64: 1, 1, 256>}, {transform_indices = @transform_6, window_bounds = array<i64: 1, 16, 16>}, {transform_indices = @transform_7, window_bounds = array<i64: 1, 1, 1, 1>}, {transform_indices = @transform_8, window_bounds = array<i64: 1, 1, 1, 1>}]} {
    %0 = arith.index_cast %arg0 : i32 to index
    %1 = memref.load %arg2[%0] : memref<2xi32, #tpu.memory_space<smem>>
    %c256_i32 = arith.constant 256 : i32
    %2 = arith.muli %arg1, %c256_i32 : i32
    %cst = arith.constant 0.000000e+00 : f32
    %3 = vector.broadcast %cst : f32 to vector<1x1x1x1xf32>
    %c0 = arith.constant 0 : index
    %c0_0 = arith.constant 0 : index
    %c0_1 = arith.constant 0 : index
    %c0_2 = arith.constant 0 : index
    %4 = vector.load %arg10[%c0, %c0_0, %c0_1, %c0_2] : memref<1x1x1x1xf32, #tpu.memory_space<vmem>>, vector<1x1x1x1xf32>
    tpu.vector_store %arg10[%c0, %c0_0, %c0_1, %c0_2], %3 {strides = array<i32>} : memref<1x1x1x1xf32, #tpu.memory_space<vmem>>, vector<1x1x1x1xf32>,
    %cst_3 = arith.constant 0.000000e+00 : f32
    %5 = vector.broadcast %cst_3 : f32 to vector<1x1x1x1xf32>
    %c0_4 = arith.constant 0 : index
    %c0_5 = arith.constant 0 : index
    %c0_6 = arith.constant 0 : index
    %c0_7 = arith.constant 0 : index
    %6 = vector.load %arg11[%c0_4, %c0_5, %c0_6, %c0_7] : memref<1x1x1x1xf32, #tpu.memory_space<vmem>>, vector<1x1x1x1xf32>
    tpu.vector_store %arg11[%c0_4, %c0_5, %c0_6, %c0_7], %5 {strides = array<i32>} : memref<1x1x1x1xf32, #tpu.memory_space<vmem>>, vector<1x1x1x1xf32>,
    %7 = arith.cmpi slt, %2, %1 : i32
    %8 = arith.extui %7 : i1 to i32
    %c0_i32 = arith.constant 0 : i32
    %9 = arith.cmpi ne, %8, %c0_i32 : i32
    scf.if %9 {
      %c0_8 = arith.constant 0 : index
      %c0_9 = arith.constant 0 : index
      %c0_10 = arith.constant 0 : index
      %10 = vector.load %arg9[%c0_8, %c0_9, %c0_10] : memref<1x16x16xf32, #tpu.memory_space<vmem>>, vector<1x16x16xf32>
      %11 = vector.shape_cast %10 : vector<1x16x16xf32> to vector<16x16xf32>
      %c0_11 = arith.constant 0 : index
      %c0_12 = arith.constant 0 : index
      %c0_13 = arith.constant 0 : index
      %12 = vector.load %arg3[%c0_11, %c0_12, %c0_13] : memref<1x1x256xi32, #tpu.memory_space<vmem>>, vector<1x1x256xi32>
      %13 = vector.shape_cast %12 : vector<1x1x256xi32> to vector<1x256xi32>
      %c0_14 = arith.constant 0 : index
      %c0_15 = arith.constant 0 : index
      %c0_16 = arith.constant 0 : index
      %14 = vector.load %arg4[%c0_14, %c0_15, %c0_16] : memref<1x1x256xi32, #tpu.memory_space<vmem>>, vector<1x1x256xi32>
      %15 = vector.shape_cast %14 : vector<1x1x256xi32> to vector<1x256xi32>
      %c0_17 = arith.constant 0 : index
      %c0_18 = arith.constant 0 : index
      %c0_19 = arith.constant 0 : index
      %16 = vector.load %arg5[%c0_17, %c0_18, %c0_19] : memref<1x1x256xi32, #tpu.memory_space<vmem>>, vector<1x1x256xi32>
      %17 = vector.shape_cast %16 : vector<1x1x256xi32> to vector<1x256xi32>
      %c0_20 = arith.constant 0 : index
      %c0_21 = arith.constant 0 : index
      %c0_22 = arith.constant 0 : index
      %18 = vector.load %arg6[%c0_20, %c0_21, %c0_22] : memref<1x1x256xi32, #tpu.memory_space<vmem>>, vector<1x1x256xi32>
      %19 = vector.shape_cast %18 : vector<1x1x256xi32> to vector<1x256xi32>
      %c0_23 = arith.constant 0 : index
      %c0_24 = arith.constant 0 : index
      %c0_25 = arith.constant 0 : index
      %20 = vector.load %arg7[%c0_23, %c0_24, %c0_25] : memref<1x1x256xi32, #tpu.memory_space<vmem>>, vector<1x1x256xi32>
      %21 = vector.shape_cast %20 : vector<1x1x256xi32> to vector<1x256xi32>
      %c0_26 = arith.constant 0 : index
      %c0_27 = arith.constant 0 : index
      %c0_28 = arith.constant 0 : index
      %22 = vector.load %arg8[%c0_26, %c0_27, %c0_28] : memref<1x1x256xf32, #tpu.memory_space<vmem>>, vector<1x1x256xf32>
      %23 = vector.shape_cast %22 : vector<1x1x256xf32> to vector<1x256xf32>
      %24 = tpu.iota {dimensions = array<i32: 0>} : vector<16x256xi32>
      %25 = tpu.iota {dimensions = array<i32: 0>} : vector<16x256xi32>
      %26 = vector.broadcast %13 : vector<1x256xi32> to vector<16x256xi32>
      %27 = arith.cmpi eq, %24, %26 : vector<16x256xi32>
      %28 = arith.extui %27 : vector<16x256xi1> to vector<16x256xi32>
      %29 = arith.sitofp %28 : vector<16x256xi32> to vector<16x256xf32>
      %cst_29 = arith.constant dense<0.000000e+00> : vector<16x256xf32>
      %30 = tpu.matmul %11, %29, %cst_29 {dimension_numbers = #tpu.dot_dimension_numbers<[1], [0], [0], [1], [0, 0, 1, 1], [], []>} : vector<16x16xf32>, vector<16x256xf32>, vector<16x256xf32> -> vector<16x256xf32>
      %31 = vector.broadcast %15 : vector<1x256xi32> to vector<16x256xi32>
      %32 = arith.cmpi eq, %25, %31 : vector<16x256xi32>
      %cst_30 = arith.constant 0.000000e+00 : f32
      %33 = vector.broadcast %cst_30 : f32 to vector<16x256xf32>
      %34 = arith.select %32, %30, %33 : vector<16x256xi1>, vector<16x256xf32>
      %cst_31 = arith.constant dense<0.000000e+00> : vector<256xf32>
      %35 = vector.multi_reduction <add>, %34, %cst_31 [0] : vector<16x256xf32> to vector<256xf32>
      %36 = vector.shape_cast %35 : vector<256xf32> to vector<1x256xf32>
      %37 = vector.broadcast %17 : vector<1x256xi32> to vector<16x256xi32>
      %38 = arith.cmpi eq, %24, %37 : vector<16x256xi32>
      %39 = arith.extui %38 : vector<16x256xi1> to vector<16x256xi32>
      %40 = arith.sitofp %39 : vector<16x256xi32> to vector<16x256xf32>
      %cst_32 = arith.constant dense<0.000000e+00> : vector<16x256xf32>
      %41 = tpu.matmul %11, %40, %cst_32 {dimension_numbers = #tpu.dot_dimension_numbers<[1], [0], [0], [1], [0, 0, 1, 1], [], []>} : vector<16x16xf32>, vector<16x256xf32>, vector<16x256xf32> -> vector<16x256xf32>
      %42 = vector.broadcast %19 : vector<1x256xi32> to vector<16x256xi32>
      %43 = arith.cmpi eq, %25, %42 : vector<16x256xi32>
      %cst_33 = arith.constant 0.000000e+00 : f32
      %44 = vector.broadcast %cst_33 : f32 to vector<16x256xf32>
      %45 = arith.select %43, %41, %44 : vector<16x256xi1>, vector<16x256xf32>
      %cst_34 = arith.constant dense<0.000000e+00> : vector<256xf32>
      %46 = vector.multi_reduction <add>, %45, %cst_34 [0] : vector<16x256xf32> to vector<256xf32>
      %47 = vector.shape_cast %46 : vector<256xf32> to vector<1x256xf32>
      %cst_35 = arith.constant 1.000000e-10 : f32
      %48 = vector.broadcast %cst_35 : f32 to vector<1x256xf32>
      %49 = arith.addf %36, %48 : vector<1x256xf32>
      %50 = arith.divf %47, %49 : vector<1x256xf32>
      %cst_36 = arith.constant 1.100000e+00 : f32
      %51 = vector.broadcast %cst_36 : f32 to vector<1x256xf32>
      %52 = arith.cmpf ogt, %50, %51 : vector<1x256xf32>
      %cst_37 = arith.constant 1.000000e-10 : f32
      %53 = vector.broadcast %cst_37 : f32 to vector<1x256xf32>
      %54 = arith.addf %47, %53 : vector<1x256xf32>
      %55 = arith.divf %36, %54 : vector<1x256xf32>
      %cst_38 = arith.constant 1.100000e+00 : f32
      %56 = vector.broadcast %cst_38 : f32 to vector<1x256xf32>
      %57 = arith.cmpf ogt, %55, %56 : vector<1x256xf32>
      %c2_i32 = arith.constant 2 : i32
      %c0_i32_39 = arith.constant 0 : i32
      %58 = vector.broadcast %c2_i32 : i32 to vector<1x256xi32>
      %59 = vector.broadcast %c0_i32_39 : i32 to vector<1x256xi32>
      %60 = arith.select %57, %58, %59 : vector<1x256xi1>, vector<1x256xi32>
      %c1_i32 = arith.constant 1 : i32
      %61 = vector.broadcast %c1_i32 : i32 to vector<1x256xi32>
      %62 = arith.select %52, %61, %60 : vector<1x256xi1>, vector<1x256xi32>
      %63 = arith.cmpi ne, %62, %21 : vector<1x256xi32>
      %64 = arith.extui %63 : vector<1x256xi1> to vector<1x256xi32>
      %65 = arith.sitofp %64 : vector<1x256xi32> to vector<1x256xf32>
      %66 = tpu.iota {dimensions = array<i32: 1>} : vector<1x256xi32>
      %67 = vector.broadcast %2 : i32 to vector<1x256xi32>
      %68 = arith.addi %66, %67 : vector<1x256xi32>
      %69 = vector.broadcast %1 : i32 to vector<1x256xi32>
      %70 = arith.cmpi slt, %68, %69 : vector<1x256xi32>
      %71 = arith.extui %70 : vector<1x256xi1> to vector<1x256xi32>
      %72 = arith.sitofp %71 : vector<1x256xi32> to vector<1x256xf32>
      %73 = arith.mulf %23, %72 : vector<1x256xf32>
      %74 = arith.mulf %73, %65 : vector<1x256xf32>
      %75 = vector.shape_cast %74 : vector<1x256xf32> to vector<1x1x256xf32>
      %cst_40 = arith.constant dense<0.000000e+00> : vector<1xf32>
      %76 = vector.multi_reduction <add>, %75, %cst_40 [1, 2] : vector<1x1x256xf32> to vector<1xf32>
      %77 = vector.shape_cast %76 : vector<1xf32> to vector<1x1x1xf32>
      %78 = vector.extract %77[0, 0, 0] : f32 from vector<1x1x1xf32>
      %79 = vector.broadcast %78 : f32 to vector<1x1x1x1xf32>
      %c0_41 = arith.constant 0 : index
      %c0_42 = arith.constant 0 : index
      %c0_43 = arith.constant 0 : index
      %c0_44 = arith.constant 0 : index
      %80 = vector.load %arg10[%c0_41, %c0_42, %c0_43, %c0_44] : memref<1x1x1x1xf32, #tpu.memory_space<vmem>>, vector<1x1x1x1xf32>
      tpu.vector_store %arg10[%c0_41, %c0_42, %c0_43, %c0_44], %79 {strides = array<i32>} : memref<1x1x1x1xf32, #tpu.memory_space<vmem>>, vector<1x1x1x1xf32>,
      %81 = vector.shape_cast %73 : vector<1x256xf32> to vector<1x1x256xf32>
      %cst_45 = arith.constant dense<0.000000e+00> : vector<1xf32>
      %82 = vector.multi_reduction <add>, %81, %cst_45 [1, 2] : vector<1x1x256xf32> to vector<1xf32>
      %83 = vector.shape_cast %82 : vector<1xf32> to vector<1x1x1xf32>
      %84 = vector.extract %83[0, 0, 0] : f32 from vector<1x1x1xf32>
      %85 = vector.broadcast %84 : f32 to vector<1x1x1x1xf32>
      %c0_46 = arith.constant 0 : index
      %c0_47 = arith.constant 0 : index
      %c0_48 = arith.constant 0 : index
      %c0_49 = arith.constant 0 : index
      %86 = vector.load %arg11[%c0_46, %c0_47, %c0_48, %c0_49] : memref<1x1x1x1xf32, #tpu.memory_space<vmem>>, vector<1x1x1x1xf32>
      tpu.vector_store %arg11[%c0_46, %c0_47, %c0_48, %c0_49], %85 {strides = array<i32>} : memref<1x1x1x1xf32, #tpu.memory_space<vmem>>, vector<1x1x1x1xf32>,
    } else {
    }
    return
  }
  func.func @transform_0(%arg0: i32, %arg1: i32, %arg2: memref<2xi32, #tpu.memory_space<smem>>) -> (i32, i32, i32) {
    %c0_i32 = arith.constant 0 : i32
    %c0_i32_0 = arith.constant 0 : i32
    return %arg0, %c0_i32, %arg1 : i32, i32, i32
  }
  func.func @transform_1(%arg0: i32, %arg1: i32, %arg2: memref<2xi32, #tpu.memory_space<smem>>) -> (i32, i32, i32) {
    %c0_i32 = arith.constant 0 : i32
    %c0_i32_0 = arith.constant 0 : i32
    return %arg0, %c0_i32, %arg1 : i32, i32, i32
  }
  func.func @transform_2(%arg0: i32, %arg1: i32, %arg2: memref<2xi32, #tpu.memory_space<smem>>) -> (i32, i32, i32) {
    %c0_i32 = arith.constant 0 : i32
    %c0_i32_0 = arith.constant 0 : i32
    return %arg0, %c0_i32, %arg1 : i32, i32, i32
  }
  func.func @transform_3(%arg0: i32, %arg1: i32, %arg2: memref<2xi32, #tpu.memory_space<smem>>) -> (i32, i32, i32) {
    %c0_i32 = arith.constant 0 : i32
    %c0_i32_0 = arith.constant 0 : i32
    return %arg0, %c0_i32, %arg1 : i32, i32, i32
  }
  func.func @transform_4(%arg0: i32, %arg1: i32, %arg2: memref<2xi32, #tpu.memory_space<smem>>) -> (i32, i32, i32) {
    %c0_i32 = arith.constant 0 : i32
    %c0_i32_0 = arith.constant 0 : i32
    return %arg0, %c0_i32, %arg1 : i32, i32, i32
  }
  func.func @transform_5(%arg0: i32, %arg1: i32, %arg2: memref<2xi32, #tpu.memory_space<smem>>) -> (i32, i32, i32) {
    %c0_i32 = arith.constant 0 : i32
    %c0_i32_0 = arith.constant 0 : i32
    return %arg0, %c0_i32, %arg1 : i32, i32, i32
  }
  func.func @transform_6(%arg0: i32, %arg1: i32, %arg2: memref<2xi32, #tpu.memory_space<smem>>) -> (i32, i32, i32) {
    %c0_i32 = arith.constant 0 : i32
    %c0_i32_0 = arith.constant 0 : i32
    %c0_i32_1 = arith.constant 0 : i32
    return %arg0, %c0_i32, %c0_i32_0 : i32, i32, i32
  }
  func.func @transform_7(%arg0: i32, %arg1: i32, %arg2: memref<2xi32, #tpu.memory_space<smem>>) -> (i32, i32, i32, i32) {
    %c0_i32 = arith.constant 0 : i32
    %c0_i32_0 = arith.constant 0 : i32
    %c0_i32_1 = arith.constant 0 : i32
    return %arg0, %arg1, %c0_i32, %c0_i32_0 : i32, i32, i32, i32
  }
  func.func @transform_8(%arg0: i32, %arg1: i32, %arg2: memref<2xi32, #tpu.memory_space<smem>>) -> (i32, i32, i32, i32) {
    %c0_i32 = arith.constant 0 : i32
    %c0_i32_0 = arith.constant 0 : i32
    %c0_i32_1 = arith.constant 0 : i32
    return %arg0, %arg1, %c0_i32, %c0_i32_0 : i32, i32, i32, i32
  }
}

</mosaic_0001>

<llo_original>
// kernel: tpu_custom_call.1
$region0: #{tpu_custom_call.1}
  #allocation0 [shape = 'u32[]', space=smem, size = 0x4, offset = 0x4, fixed_abs, tag = 'smem constant byte address 0x4 - core index']
  #allocation1 [shape = 'u32[72,128]{1,0:T(1,128)}', space=vmem, size = 0x9000, scoped, tag = 'internal scratch']
  #allocation2 [shape = 's32[1]{0}', space=sflag, size = 0x4, scoped, tag = 'scoped memory for tpu_custom_call.1']
  #allocation3 [shape = 'u8[512]{0}', space=smem, size = 0x200, scoped, tag = 'prefetched SMEM operand 0']
  %s0 = inlined_call_operand.hbm [shape: s32[2], index: 0, kind: input, shape index: {}]
  %s1 = inlined_call_operand.hbm [shape: s32[2,1,256], index: 1, kind: input, shape index: {}]
  %s2 = inlined_call_operand.hbm [shape: s32[2,1,256], index: 2, kind: input, shape index: {}]
  %s3 = inlined_call_operand.hbm [shape: s32[2,1,256], index: 3, kind: input, shape index: {}]
  %s4 = inlined_call_operand.hbm [shape: s32[2,1,256], index: 4, kind: input, shape index: {}]
  %s5 = inlined_call_operand.vmem [shape: s32[2,1,256], index: 5, kind: input, shape index: {}]
  %s6 = inlined_call_operand.hbm [shape: f32[2,1,256], index: 6, kind: input, shape index: {}]
  %s7 = inlined_call_operand.hbm [shape: f32[2,16,16], index: 7, kind: input, shape index: {}]
  %s8 = inlined_call_operand.vmem [shape: f32[2,1,1,1], index: 8, kind: output, shape index: {0}]
  %s9 = inlined_call_operand.vmem [shape: f32[2,1,1,1], index: 9, kind: output, shape index: {1}]
  %10 = xla_tuple %s8, %s9
  %s11 = sld [smem:[#allocation0]]
  $region97: #{tpu_custom_call.1} parent=0
    _
  %s13 = ssub.s32 1, %s11
  %s14 = scalar_select 0, %s13, %s11
  %s16 = sshll.u32 %s0, 4
  %s17 = int_to_ptr.hbm [resolvable:$true] %s16
  %19 = dma.hbm_to_smem %s17, 16, [#allocation3], [#allocation2]
  %21 = dma.done [#allocation2], 16
  %22 = sfence
  $region1: #{tpu_custom_call.1} parent=0
    #allocation4 [shape = 'u8[2048]{0}', space=vmem, size = 0x800, scoped, tag = 'input window, operand 1']
    #allocation5 [shape = 's32[2]{0}', space=sflag, size = 0x8, scoped, tag = 'scoped memory for tpu_custom_call.1']
    #allocation6 [shape = 'u8[2048]{0}', space=vmem, size = 0x800, scoped, tag = 'input window, operand 2']
    #allocation7 [shape = 's32[2]{0}', space=sflag, size = 0x8, scoped, tag = 'scoped memory for tpu_custom_call.1']
    #allocation8 [shape = 'u8[2048]{0}', space=vmem, size = 0x800, scoped, tag = 'input window, operand 3']
    #allocation9 [shape = 'u8[2048]{0}', space=vmem, size = 0x800, scoped, tag = 'input window, operand 4']
    #allocation10 [shape = 's32[2]{0}', space=sflag, size = 0x8, scoped, tag = 'scoped memory for tpu_custom_call.1']
    #allocation11 [shape = 'u8[2048]{0}', space=vmem, size = 0x800, scoped, tag = 'input window, operand 6']
    #allocation12 [shape = 'u8[16384]{0}', space=vmem, size = 0x4000, scoped, tag = 'input window, operand 7']
    #allocation13 [shape = 's32[2]{0}', space=sflag, size = 0x8, scoped, tag = 'scoped memory for tpu_custom_call.1']
    %23 = vsyncpa [#allocation5], 0
    %s24 = scalar_lea.sflag [#allocation5], 1
    %25 = vsyncpa %s24, 0
    %26 = vsyncpa [#allocation7], 0
    %s27 = scalar_lea.sflag [#allocation7], 1
    %28 = vsyncpa %s27, 0
    %29 = vsyncpa [#allocation10], 0
    %s30 = scalar_lea.sflag [#allocation10], 1
    %31 = vsyncpa %s30, 0
    %32 = vsyncpa [#allocation13], 0
    %s33 = scalar_lea.sflag [#allocation13], 1
    %34 = vsyncpa %s33, 0
    loop: start=0, step=1, limit=4
    $region2: #{tpu_custom_call.1} parent=1 // loop_pre_header
      _
    $region3: #{tpu_custom_call.1} parent=1 // loop_header
      %s36 = sphi 0, %s40
      %p37 = scmp.ge.s32.totalorder %s36, 4
      %s43 = sphi 0, %s55
      %s44 = sphi 0, %s51
      %s45 = sphi 0, %s43
      %s46 = sphi 0, %s44
      %s47 = sphi 0, %s45
      %s48 = sphi 0, %s46
      %s60 = sphi 0, %s62
      %s63 = sphi 0, %s60
      %s64 = sphi 0, %s63
      %s80 = sphi 0, %s64
      %s88 = sphi 0, %s90
      %s91 = sphi 0, %s88
      %s92 = sphi 0, %s91
      %s108 = sphi 0, %s92
      %s116 = sphi 0, %s118
      %s119 = sphi 0, %s116
      %s120 = sphi 0, %s119
      %s136 = sphi 0, %s120
      %s144 = sphi 0, %s146
      %s147 = sphi 0, %s144
      %s148 = sphi 0, %s147
      %s164 = sphi 0, %s148
      %s172 = sphi 0, %s174
      %s175 = sphi 0, %s172
      %s176 = sphi 0, %s175
      %s192 = sphi 0, %s176
      %s200 = sphi 0, %s202
      %s203 = sphi 0, %s200
      %s204 = sphi 0, %s203
      %s220 = sphi 0, %s204
      %s226 = sphi 0, %s228
      %s229 = sphi 0, %s226
      %s230 = sphi 0, %s229
      %s246 = sphi 0, %s230
      %s254 = sphi 0, %s256
      %s257 = sphi 0, %s254
      %s258 = sphi 0, %s257
      %s274 = sphi 0, %s258
      %s282 = sphi 0, %s284
      %s285 = sphi 0, %s282
      %s286 = sphi 0, %s285
      %s302 = sphi 0, %s286
    $region4: #{tpu_custom_call.1} parent=1 // loop_header_branch
      %39 = sbr.rel (%p37) target = $region8
    $region5: #{tpu_custom_call.1} parent=1 // loop_body
      %s41 = ssub.s32 %s36, 1
      %s42 = ssub.s32 %s36, 2
      %s49 = sadd.s32 1, %s44
      %p50 = scmp.ge.s32.totalorder %s49, 1
      %s51 = scalar_select %p50, 0, %s49
      %s52 = sadd.s32 1, %s43
      %s53 = scalar_select %p50, %s52, %s43
      %p54 = scmp.ge.s32.totalorder %s53, 2
      %s55 = scalar_select %p54, 0, %s53
      %s56 = ssub.s32 %s43, %s55
      %s57 = ssub.s32 %s44, %s51
      %s58 = sor.u32 %s56, %s57
      %p59 = scmp.eq.s32.totalorder %s58, 0
      %s61 = sadd.s32 %s60, 1
      %s62 = scalar_select %p59, %s60, %s61
      %p65 = pneg %p59
      %p66 = scmp.eq.s32.totalorder %s36, 1
      %p67 = por %p65, %p66
      %p68 = scmp.ne.s32.totalorder %s60, %s63
      %p69 = scmp.eq.s32.totalorder %s36, 0
      %p70 = por %p68, %p69
      %p71 = scmp.ne.s32.totalorder %s60, %s63
      %p72 = scmp.eq.s32.totalorder %s41, 1
      %p73 = por %p71, %p72
      %p74 = scmp.ne.s32.totalorder %s63, %s64
      %p75 = scmp.eq.s32.totalorder %s41, 0
      %p76 = por %p74, %p75
      %p77 = scmp.ne.s32.totalorder %s63, %s64
      %p78 = scmp.eq.s32.totalorder %s42, 1
      %p79 = por %p77, %p78
      %p81 = scmp.ne.s32.totalorder %s64, %s80
      %p82 = scmp.eq.s32.totalorder %s42, 0
      %p83 = por %p81, %p82
      %s84 = ssub.s32 %s43, %s55
      %s85 = ssub.s32 %s44, %s51
      %s86 = sor.u32 %s84, %s85
      %p87 = scmp.eq.s32.totalorder %s86, 0
      %s89 = sadd.s32 %s88, 1
      %s90 = scalar_select %p87, %s88, %s89
      %p93 = pneg %p87
      %p94 = scmp.eq.s32.totalorder %s36, 1
      %p95 = por %p93, %p94
      %p96 = scmp.ne.s32.totalorder %s88, %s91
      %p97 = scmp.eq.s32.totalorder %s36, 0
      %p98 = por %p96, %p97
      %p99 = scmp.ne.s32.totalorder %s88, %s91
      %p100 = scmp.eq.s32.totalorder %s41, 1
      %p101 = por %p99, %p100
      %p102 = scmp.ne.s32.totalorder %s91, %s92
      %p103 = scmp.eq.s32.totalorder %s41, 0
      %p104 = por %p102, %p103
      %p105 = scmp.ne.s32.totalorder %s91, %s92
      %p106 = scmp.eq.s32.totalorder %s42, 1
      %p107 = por %p105, %p106
      %p109 = scmp.ne.s32.totalorder %s92, %s108
      %p110 = scmp.eq.s32.totalorder %s42, 0
      %p111 = por %p109, %p110
      %s112 = ssub.s32 %s43, %s55
      %s113 = ssub.s32 %s44, %s51
      %s114 = sor.u32 %s112, %s113
      %p115 = scmp.eq.s32.totalorder %s114, 0
      %s117 = sadd.s32 %s116, 1
      %s118 = scalar_select %p115, %s116, %s117
      %p121 = pneg %p115
      %p122 = scmp.eq.s32.totalorder %s36, 1
      %p123 = por %p121, %p122
      %p124 = scmp.ne.s32.totalorder %s116, %s119
      %p125 = scmp.eq.s32.totalorder %s36, 0
      %p126 = por %p124, %p125
      %p127 = scmp.ne.s32.totalorder %s116, %s119
      %p128 = scmp.eq.s32.totalorder %s41, 1
      %p129 = por %p127, %p128
      %p130 = scmp.ne.s32.totalorder %s119, %s120
      %p131 = scmp.eq.s32.totalorder %s41, 0
      %p132 = por %p130, %p131
      %p133 = scmp.ne.s32.totalorder %s119, %s120
      %p134 = scmp.eq.s32.totalorder %s42, 1
      %p135 = por %p133, %p134
      %p137 = scmp.ne.s32.totalorder %s120, %s136
      %p138 = scmp.eq.s32.totalorder %s42, 0
      %p139 = por %p137, %p138
      %s140 = ssub.s32 %s43, %s55
      %s141 = ssub.s32 %s44, %s51
      %s142 = sor.u32 %s140, %s141
      %p143 = scmp.eq.s32.totalorder %s142, 0
      %s145 = sadd.s32 %s144, 1
      %s146 = scalar_select %p143, %s144, %s145
      %p149 = pneg %p143
      %p150 = scmp.eq.s32.totalorder %s36, 1
      %p151 = por %p149, %p150
      %p152 = scmp.ne.s32.totalorder %s144, %s147
      %p153 = scmp.eq.s32.totalorder %s36, 0
      %p154 = por %p152, %p153
      %p155 = scmp.ne.s32.totalorder %s144, %s147
      %p156 = scmp.eq.s32.totalorder %s41, 1
      %p157 = por %p155, %p156
      %p158 = scmp.ne.s32.totalorder %s147, %s148
      %p159 = scmp.eq.s32.totalorder %s41, 0
      %p160 = por %p158, %p159
      %p161 = scmp.ne.s32.totalorder %s147, %s148
      %p162 = scmp.eq.s32.totalorder %s42, 1
      %p163 = por %p161, %p162
      %p165 = scmp.ne.s32.totalorder %s148, %s164
      %p166 = scmp.eq.s32.totalorder %s42, 0
      %p167 = por %p165, %p166
      %s168 = ssub.s32 %s43, %s55
      %s169 = ssub.s32 %s44, %s51
      %s170 = sor.u32 %s168, %s169
      %p171 = scmp.eq.s32.totalorder %s170, 0
      %s173 = sadd.s32 %s172, 1
      %s174 = scalar_select %p171, %s172, %s173
      %p177 = pneg %p171
      %p178 = scmp.eq.s32.totalorder %s36, 1
      %p179 = por %p177, %p178
      %p180 = scmp.ne.s32.totalorder %s172, %s175
      %p181 = scmp.eq.s32.totalorder %s36, 0
      %p182 = por %p180, %p181
      %p183 = scmp.ne.s32.totalorder %s172, %s175
      %p184 = scmp.eq.s32.totalorder %s41, 1
      %p185 = por %p183, %p184
      %p186 = scmp.ne.s32.totalorder %s175, %s176
      %p187 = scmp.eq.s32.totalorder %s41, 0
      %p188 = por %p186, %p187
      %p189 = scmp.ne.s32.totalorder %s175, %s176
      %p190 = scmp.eq.s32.totalorder %s42, 1
      %p191 = por %p189, %p190
      %p193 = scmp.ne.s32.totalorder %s176, %s192
      %p194 = scmp.eq.s32.totalorder %s42, 0
      %p195 = por %p193, %p194
      %s196 = ssub.s32 %s43, %s55
      %s197 = ssub.s32 %s44, %s51
      %s198 = sor.u32 %s196, %s197
      %p199 = scmp.eq.s32.totalorder %s198, 0
      %s201 = sadd.s32 %s200, 1
      %s202 = scalar_select %p199, %s200, %s201
      %p205 = pneg %p199
      %p206 = scmp.eq.s32.totalorder %s36, 1
      %p207 = por %p205, %p206
      %p208 = scmp.ne.s32.totalorder %s200, %s203
      %p209 = scmp.eq.s32.totalorder %s36, 0
      %p210 = por %p208, %p209
      %p211 = scmp.ne.s32.totalorder %s200, %s203
      %p212 = scmp.eq.s32.totalorder %s41, 1
      %p213 = por %p211, %p212
      %p214 = scmp.ne.s32.totalorder %s203, %s204
      %p215 = scmp.eq.s32.totalorder %s41, 0
      %p216 = por %p214, %p215
      %p217 = scmp.ne.s32.totalorder %s203, %s204
      %p218 = scmp.eq.s32.totalorder %s42, 1
      %p219 = por %p217, %p218
      %p221 = scmp.ne.s32.totalorder %s204, %s220
      %p222 = scmp.eq.s32.totalorder %s42, 0
      %p223 = por %p221, %p222
      %s224 = ssub.s32 %s43, %s55
      %p225 = scmp.eq.s32.totalorder %s224, 0
      %s227 = sadd.s32 %s226, 1
      %s228 = scalar_select %p225, %s226, %s227
      %p231 = pneg %p225
      %p232 = scmp.eq.s32.totalorder %s36, 1
      %p233 = por %p231, %p232
      %p234 = scmp.ne.s32.totalorder %s226, %s229
      %p235 = scmp.eq.s32.totalorder %s36, 0
      %p236 = por %p234, %p235
      %p237 = scmp.ne.s32.totalorder %s226, %s229
      %p238 = scmp.eq.s32.totalorder %s41, 1
      %p239 = por %p237, %p238
      %p240 = scmp.ne.s32.totalorder %s229, %s230
      %p241 = scmp.eq.s32.totalorder %s41, 0
      %p242 = por %p240, %p241
      %p243 = scmp.ne.s32.totalorder %s229, %s230
      %p244 = scmp.eq.s32.totalorder %s42, 1
      %p245 = por %p243, %p244
      %p247 = scmp.ne.s32.totalorder %s230, %s246
      %p248 = scmp.eq.s32.totalorder %s42, 0
      %p249 = por %p247, %p248
      %s250 = ssub.s32 %s43, %s55
      %s251 = ssub.s32 %s44, %s51
      %s252 = sor.u32 %s250, %s251
      %p253 = scmp.eq.s32.totalorder %s252, 0
      %s255 = sadd.s32 %s254, 1
      %s256 = scalar_select %p253, %s254, %s255
      %p259 = pneg %p253
      %p260 = scmp.eq.s32.totalorder %s36, 1
      %p261 = por %p259, %p260
      %p262 = scmp.ne.s32.totalorder %s254, %s257
      %p263 = scmp.eq.s32.totalorder %s36, 0
      %p264 = por %p262, %p263
      %p265 = scmp.ne.s32.totalorder %s254, %s257
      %p266 = scmp.eq.s32.totalorder %s41, 1
      %p267 = por %p265, %p266
      %p268 = scmp.ne.s32.totalorder %s257, %s258
      %p269 = scmp.eq.s32.totalorder %s41, 0
      %p270 = por %p268, %p269
      %p271 = scmp.ne.s32.totalorder %s257, %s258
      %p272 = scmp.eq.s32.totalorder %s42, 1
      %p273 = por %p271, %p272
      %p275 = scmp.ne.s32.totalorder %s258, %s274
      %p276 = scmp.eq.s32.totalorder %s42, 0
      %p277 = por %p275, %p276
      %s278 = ssub.s32 %s43, %s55
      %s279 = ssub.s32 %s44, %s51
      %s280 = sor.u32 %s278, %s279
      %p281 = scmp.eq.s32.totalorder %s280, 0
      %s283 = sadd.s32 %s282, 1
      %s284 = scalar_select %p281, %s282, %s283
      %p287 = pneg %p281
      %p288 = scmp.eq.s32.totalorder %s36, 1
      %p289 = por %p287, %p288
      %p290 = scmp.ne.s32.totalorder %s282, %s285
      %p291 = scmp.eq.s32.totalorder %s36, 0
      %p292 = por %p290, %p291
      %p293 = scmp.ne.s32.totalorder %s282, %s285
      %p294 = scmp.eq.s32.totalorder %s41, 1
      %p295 = por %p293, %p294
      %p296 = scmp.ne.s32.totalorder %s285, %s286
      %p297 = scmp.eq.s32.totalorder %s41, 0
      %p298 = por %p296, %p297
      %p299 = scmp.ne.s32.totalorder %s285, %s286
      %p300 = scmp.eq.s32.totalorder %s42, 1
      %p301 = por %p299, %p300
      %p303 = scmp.ne.s32.totalorder %s286, %s302
      %p304 = scmp.eq.s32.totalorder %s42, 0
      %p305 = por %p303, %p304
      %p306 = scmp.le.s32.totalorder 1, %s36
      %p307 = scmp.lt.s32.totalorder %s36, 3
      %p308 = pnand %p306, %p307
      %p309 = pneg %p308
      // Predicated region
      $region9: #{tpu_custom_call.1} parent=5 // pred_check
        _
      $region10: #{tpu_custom_call.1} parent=5 // pred_check_branch
        %311 = sbr.rel (%p308) target = $region12
      $region11: #{tpu_custom_call.1} parent=5 // pred_region
        %s312 = ssub.s32 %s36, 1
      $region12: #{tpu_custom_call.1} parent=5 // pred_fallthru
        _
      %p313 = scmp.lt.s32.totalorder %s36, 2
      // Predicated region
      $region13: #{tpu_custom_call.1} parent=5 // pred_check
        %p314 = pneg %p313
      $region14: #{tpu_custom_call.1} parent=5 // pred_check_branch
        %316 = sbr.rel (%p314) target = $region16
      $region15: #{tpu_custom_call.1} parent=5 // pred_region
        // Predicated region
        $region17: #{tpu_custom_call.1} parent=15 // pred_check
          %p317 = pneg %p70
        $region18: #{tpu_custom_call.1} parent=15 // pred_check_branch
          %319 = sbr.rel (%p317) target = $region20
        $region19: #{tpu_custom_call.1} parent=15 // pred_region
          %s320 = sand.u32 %s60, 1
          %s321 = scalar_lea.sflag [#allocation5], %s320
          %s322 = sand.u32 %s60, 1
          %s323 = smul.addr %s322, 2
          %s324 = scalar_lea.vmem [#allocation4], %s323
          %s325 = smul.u32 2, %s44
          %327 = vsyncadd %s321, 0
          %s328 = smul.addr %s43, 2
          %s329 = sadd.s32 %s325, %s328
          %s330 = scalar_lea.hbm %s1, %s329
          %s332 = sshll.u32 %s330, 4
          %s333 = int_to_ptr.hbm [resolvable:$true] %s332
          %s334 = sshll.u32 %s324, 4
          %s335 = int_to_ptr.vmem [resolvable:$true] %s334
          %337 = dma.hbm_to_vmem [thread:$0]  %s333, 32, %s335, %s321
        $region20: #{tpu_custom_call.1} parent=15 // pred_fallthru
          _
        // Predicated region
        $region21: #{tpu_custom_call.1} parent=15 // pred_check
          %p338 = pneg %p98
        $region22: #{tpu_custom_call.1} parent=15 // pred_check_branch
          %340 = sbr.rel (%p338) target = $region24
        $region23: #{tpu_custom_call.1} parent=15 // pred_region
          %s341 = sand.u32 %s36, 1
          %s342 = scalar_lea.sflag [#allocation7], %s341
          %s343 = sand.u32 %s88, 1
          %s344 = smul.addr %s343, 2
          %s345 = scalar_lea.vmem [#allocation6], %s344
          %s346 = smul.u32 2, %s44
          %348 = vsyncadd %s342, 0
          %s349 = smul.addr %s43, 2
          %s350 = sadd.s32 %s346, %s349
          %s351 = scalar_lea.hbm %s2, %s350
          %s353 = sshll.u32 %s351, 4
          %s354 = int_to_ptr.hbm [resolvable:$true] %s353
          %s355 = sshll.u32 %s345, 4
          %s356 = int_to_ptr.vmem [resolvable:$true] %s355
          %358 = dma.hbm_to_vmem [thread:$0]  %s354, 32, %s356, %s342
        $region24: #{tpu_custom_call.1} parent=15 // pred_fallthru
          _
        // Predicated region
        $region25: #{tpu_custom_call.1} parent=15 // pred_check
          %p359 = pneg %p126
        $region26: #{tpu_custom_call.1} parent=15 // pred_check_branch
          %361 = sbr.rel (%p359) target = $region28
        $region27: #{tpu_custom_call.1} parent=15 // pred_region
          %s362 = sand.u32 %s36, 1
          %s363 = scalar_lea.sflag [#allocation7], %s362
          %s364 = sand.u32 %s116, 1
          %s365 = smul.addr %s364, 2
          %s366 = scalar_lea.vmem [#allocation8], %s365
          %s367 = smul.u32 2, %s44
          %369 = vsyncadd %s363, 0
          %s370 = smul.addr %s43, 2
          %s371 = sadd.s32 %s367, %s370
          %s372 = scalar_lea.hbm %s3, %s371
          %s374 = sshll.u32 %s372, 4
          %s375 = int_to_ptr.hbm [resolvable:$true] %s374
          %s376 = sshll.u32 %s366, 4
          %s377 = int_to_ptr.vmem [resolvable:$true] %s376
          %379 = dma.hbm_to_vmem [thread:$0]  %s375, 32, %s377, %s363
        $region28: #{tpu_custom_call.1} parent=15 // pred_fallthru
          _
        // Predicated region
        $region29: #{tpu_custom_call.1} parent=15 // pred_check
          %p380 = pneg %p154
        $region30: #{tpu_custom_call.1} parent=15 // pred_check_branch
          %382 = sbr.rel (%p380) target = $region32
        $region31: #{tpu_custom_call.1} parent=15 // pred_region
          %s383 = sand.u32 %s36, 1
          %s384 = scalar_lea.sflag [#allocation10], %s383
          %s385 = sand.u32 %s144, 1
          %s386 = smul.addr %s385, 2
          %s387 = scalar_lea.vmem [#allocation9], %s386
          %s388 = smul.u32 2, %s44
          %390 = vsyncadd %s384, 0
          %s391 = smul.addr %s43, 2
          %s392 = sadd.s32 %s388, %s391
          %s393 = scalar_lea.hbm %s4, %s392
          %s395 = sshll.u32 %s393, 4
          %s396 = int_to_ptr.hbm [resolvable:$true] %s395
          %s397 = sshll.u32 %s387, 4
          %s398 = int_to_ptr.vmem [resolvable:$true] %s397
          %400 = dma.hbm_to_vmem [thread:$0]  %s396, 32, %s398, %s384
        $region32: #{tpu_custom_call.1} parent=15 // pred_fallthru
          _
        // Predicated region
        $region33: #{tpu_custom_call.1} parent=15 // pred_check
          %p401 = pneg %p182
        $region34: #{tpu_custom_call.1} parent=15 // pred_check_branch
          %403 = sbr.rel (%p401) target = $region36
        $region35: #{tpu_custom_call.1} parent=15 // pred_region
          %s404 = smul.u32 2, %s44
          %p405 = scmp.lt.s32.totalorder %s43, 1
          %s406 = scalar_select %p405, %s43, 1
          %p407 = scmp.lt.s32.totalorder %s404, 1
          %s408 = scalar_select %p407, %s404, 1
          %s409 = smul.addr %s406, 2
          %s410 = sadd.s32 %s408, %s409
          %s411 = scalar_lea.vmem %s5, %s410
          %s412 = smul.u32 2, %s44
        $region36: #{tpu_custom_call.1} parent=15 // pred_fallthru
          _
        // Predicated region
        $region37: #{tpu_custom_call.1} parent=15 // pred_check
          %p413 = pneg %p210
        $region38: #{tpu_custom_call.1} parent=15 // pred_check_branch
          %415 = sbr.rel (%p413) target = $region40
        $region39: #{tpu_custom_call.1} parent=15 // pred_region
          %s416 = sand.u32 %s36, 1
          %s417 = scalar_lea.sflag [#allocation10], %s416
          %s418 = sand.u32 %s200, 1
          %s419 = smul.addr %s418, 2
          %s420 = scalar_lea.vmem [#allocation11], %s419
          %s421 = smul.u32 2, %s44
          %423 = vsyncadd %s417, 0
          %s424 = smul.addr %s43, 2
          %s425 = sadd.s32 %s421, %s424
          %s426 = scalar_lea.hbm %s6, %s425
          %s428 = sshll.u32 %s426, 4
          %s429 = int_to_ptr.hbm [resolvable:$true] %s428
          %s430 = sshll.u32 %s420, 4
          %s431 = int_to_ptr.vmem [resolvable:$true] %s430
          %433 = dma.hbm_to_vmem [thread:$0]  %s429, 32, %s431, %s417
        $region40: #{tpu_custom_call.1} parent=15 // pred_fallthru
          _
        // Predicated region
        $region41: #{tpu_custom_call.1} parent=15 // pred_check
          %p434 = pneg %p236
        $region42: #{tpu_custom_call.1} parent=15 // pred_check_branch
          %436 = sbr.rel (%p434) target = $region44
        $region43: #{tpu_custom_call.1} parent=15 // pred_region
          %s437 = sand.u32 %s226, 1
          %s438 = scalar_lea.sflag [#allocation13], %s437
          %s439 = sand.u32 %s226, 1
          %s440 = smul.addr %s439, 16
          %s441 = scalar_lea.vmem [#allocation12], %s440
          %443 = vsyncadd %s438, 0
          %s444 = smul.addr %s43, 2
          %s445 = smul.addr %s444, 8
          %s446 = scalar_lea.hbm %s7, %s445
          %s447 = sshll.u32 %s446, 4
          %s448 = int_to_ptr.hbm [resolvable:$true] %s447
          %s449 = sshll.u32 %s441, 4
          %s450 = int_to_ptr.vmem [resolvable:$true] %s449
          %455 = dma.hbm_to_vmem [thread:$0]  %s448, 256, %s450, %s438, 128, 128, 8
        $region44: #{tpu_custom_call.1} parent=15 // pred_fallthru
          _
      $region16: #{tpu_custom_call.1} parent=5 // pred_fallthru
        _
      %p456 = scmp.le.s32.totalorder 1, %s36
      %p457 = scmp.lt.s32.totalorder %s36, 3
      %p458 = pnand %p456, %p457
      %p459 = pneg %p458
      // Predicated region
      $region45: #{tpu_custom_call.1} parent=5 // pred_check
        _
      $region46: #{tpu_custom_call.1} parent=5 // pred_check_branch
        %461 = sbr.rel (%p458) target = $region48
      $region47: #{tpu_custom_call.1} parent=5 // pred_region
        %s462 = ssub.s32 %s36, 1
        %s463 = sand.u32 %s63, 1
        %s464 = scalar_lea.sflag [#allocation5], %s463
        %s465 = sand.u32 %s63, 1
        %s466 = smul.addr %s465, 2
        %s467 = scalar_lea.vmem [#allocation4], %s466
        // Predicated region
        $region49: #{tpu_custom_call.1} parent=47 // pred_check
          %p468 = pneg %p76
        $region50: #{tpu_custom_call.1} parent=47 // pred_check_branch
          %470 = sbr.rel (%p468) target = $region52
        $region51: #{tpu_custom_call.1} parent=47 // pred_region
          %472 = dma.done %s464, 32
        $region52: #{tpu_custom_call.1} parent=47 // pred_fallthru
          _
        %s473 = sand.u32 %s41, 1
        %s474 = scalar_lea.sflag [#allocation7], %s473
        %s475 = sand.u32 %s91, 1
        %s476 = smul.addr %s475, 2
        %s477 = scalar_lea.vmem [#allocation6], %s476
        // Predicated region
        $region53: #{tpu_custom_call.1} parent=47 // pred_check
          %p478 = pneg %p104
        $region54: #{tpu_custom_call.1} parent=47 // pred_check_branch
          %480 = sbr.rel (%p478) target = $region56
        $region55: #{tpu_custom_call.1} parent=47 // pred_region
          %482 = dma.done %s474, 32
        $region56: #{tpu_custom_call.1} parent=47 // pred_fallthru
          _
        %s483 = sand.u32 %s41, 1
        %s484 = scalar_lea.sflag [#allocation7], %s483
        %s485 = sand.u32 %s119, 1
        %s486 = smul.addr %s485, 2
        %s487 = scalar_lea.vmem [#allocation8], %s486
        // Predicated region
        $region57: #{tpu_custom_call.1} parent=47 // pred_check
          %p488 = pneg %p132
        $region58: #{tpu_custom_call.1} parent=47 // pred_check_branch
          %490 = sbr.rel (%p488) target = $region60
        $region59: #{tpu_custom_call.1} parent=47 // pred_region
          %492 = dma.done %s484, 32
        $region60: #{tpu_custom_call.1} parent=47 // pred_fallthru
          _
        %s493 = sand.u32 %s41, 1
        %s494 = scalar_lea.sflag [#allocation10], %s493
        %s495 = sand.u32 %s147, 1
        %s496 = smul.addr %s495, 2
        %s497 = scalar_lea.vmem [#allocation9], %s496
        // Predicated region
        $region61: #{tpu_custom_call.1} parent=47 // pred_check
          %p498 = pneg %p160
        $region62: #{tpu_custom_call.1} parent=47 // pred_check_branch
          %500 = sbr.rel (%p498) target = $region64
        $region63: #{tpu_custom_call.1} parent=47 // pred_region
          %502 = dma.done %s494, 32
        $region64: #{tpu_custom_call.1} parent=47 // pred_fallthru
          _
        %s503 = sand.u32 %s41, 1
        %s504 = scalar_lea.sflag [#allocation10], %s503
        %s505 = sand.u32 %s203, 1
        %s506 = smul.addr %s505, 2
        %s507 = scalar_lea.vmem [#allocation11], %s506
        // Predicated region
        $region65: #{tpu_custom_call.1} parent=47 // pred_check
          %p508 = pneg %p216
        $region66: #{tpu_custom_call.1} parent=47 // pred_check_branch
          %510 = sbr.rel (%p508) target = $region68
        $region67: #{tpu_custom_call.1} parent=47 // pred_region
          %512 = dma.done %s504, 32
        $region68: #{tpu_custom_call.1} parent=47 // pred_fallthru
          _
        %s513 = sand.u32 %s229, 1
        %s514 = scalar_lea.sflag [#allocation13], %s513
        %s515 = sand.u32 %s229, 1
        %s516 = smul.addr %s515, 16
        %s517 = scalar_lea.vmem [#allocation12], %s516
        // Predicated region
        $region69: #{tpu_custom_call.1} parent=47 // pred_check
          %p518 = pneg %p242
        $region70: #{tpu_custom_call.1} parent=47 // pred_check_branch
          %520 = sbr.rel (%p518) target = $region72
        $region71: #{tpu_custom_call.1} parent=47 // pred_region
          %522 = dma.done %s514, 256
        $region72: #{tpu_custom_call.1} parent=47 // pred_fallthru
          _
        %s523 = sand.u32 %s63, 1
        %s524 = scalar_lea.sflag [#allocation5], %s523
        %s525 = sand.u32 %s63, 1
        %s526 = smul.addr %s525, 2
        %s527 = scalar_lea.vmem [#allocation4], %s526
        %p528 = pneg %p76
        %p529 = pneg %p73
        %s530 = sand.u32 %s41, 1
        %s531 = scalar_lea.sflag [#allocation7], %s530
        %s532 = sand.u32 %s91, 1
        %s533 = smul.addr %s532, 2
        %s534 = scalar_lea.vmem [#allocation6], %s533
        %p535 = pneg %p104
        %p536 = pneg %p101
        %s537 = sand.u32 %s41, 1
        %s538 = scalar_lea.sflag [#allocation7], %s537
        %s539 = sand.u32 %s119, 1
        %s540 = smul.addr %s539, 2
        %s541 = scalar_lea.vmem [#allocation8], %s540
        %p542 = pneg %p132
        %p543 = pneg %p129
        %s544 = sand.u32 %s41, 1
        %s545 = scalar_lea.sflag [#allocation10], %s544
        %s546 = sand.u32 %s147, 1
        %s547 = smul.addr %s546, 2
        %s548 = scalar_lea.vmem [#allocation9], %s547
        %p549 = pneg %p160
        %p550 = pneg %p157
        %s551 = smul.u32 2, %s46
        %p552 = scmp.lt.s32.totalorder %s45, 1
        %s553 = scalar_select %p552, %s45, 1
        %p554 = scmp.lt.s32.totalorder %s551, 1
        %s555 = scalar_select %p554, %s551, 1
        %s556 = smul.addr %s553, 2
        %s557 = sadd.s32 %s555, %s556
        %s558 = scalar_lea.vmem %s5, %s557
        %p559 = pneg %p188
        %p560 = pneg %p185
        %s561 = sand.u32 %s41, 1
        %s562 = scalar_lea.sflag [#allocation10], %s561
        %s563 = sand.u32 %s203, 1
        %s564 = smul.addr %s563, 2
        %s565 = scalar_lea.vmem [#allocation11], %s564
        %p566 = pneg %p216
        %p567 = pneg %p213
        %s568 = sand.u32 %s229, 1
        %s569 = scalar_lea.sflag [#allocation13], %s568
        %s570 = sand.u32 %s229, 1
        %s571 = smul.addr %s570, 16
        %s572 = scalar_lea.vmem [#allocation12], %s571
        %p573 = pneg %p242
        %p574 = pneg %p239
        %p575 = pneg %p270
        %p576 = pneg %p267
        %p577 = scmp.lt.s32.totalorder %s45, 1
        %s578 = scalar_select %p577, %s45, 1
        %p579 = scmp.lt.s32.totalorder %s46, 0
        %s580 = scalar_select %p579, %s46, 0
        %s581 = sadd.s32 %s580, %s578
        %s582 = scalar_lea.vmem %s8, %s581
        %p583 = pneg %p298
        %p584 = pneg %p295
        %p585 = scmp.lt.s32.totalorder %s45, 1
        %s586 = scalar_select %p585, %s45, 1
        %p587 = scmp.lt.s32.totalorder %s46, 0
        %s588 = scalar_select %p587, %s46, 0
        %s589 = sadd.s32 %s588, %s586
        %s590 = scalar_lea.vmem %s9, %s589
        %s591 = smul.u32 2, %s46
        %s592 = smul.u32 2, %s46
        %s593 = smul.u32 2, %s46
        %s594 = smul.u32 2, %s46
        %s595 = smul.u32 2, %s46
        %p596 = scmp.lt.s32.totalorder %s45, 1
        %s597 = scalar_select %p596, %s45, 1
        %p598 = scmp.lt.s32.totalorder %s595, 1
        %s599 = scalar_select %p598, %s595, 1
        %s600 = smul.addr %s597, 2
        %s601 = sadd.s32 %s599, %s600
        %s602 = scalar_lea.vmem %s5, %s601
        %s603 = smul.u32 2, %s46
        %s604 = smul.u32 2, %s46
        %p605 = scmp.lt.s32.totalorder %s45, 1
        %s606 = scalar_select %p605, %s45, 1
        %p607 = scmp.lt.s32.totalorder %s46, 0
        %s608 = scalar_select %p607, %s46, 0
        %s609 = sadd.s32 %s608, %s606
        %s610 = scalar_lea.vmem %s8, %s609
        %p611 = scmp.lt.s32.totalorder %s45, 1
        %s612 = scalar_select %p611, %s45, 1
        %p613 = scmp.lt.s32.totalorder %s46, 0
        %s614 = scalar_select %p613, %s46, 0
        %s615 = sadd.s32 %s614, %s612
        %s616 = scalar_lea.vmem %s9, %s615
        %s617 = sld [smem:[#allocation3 + %s45]]
        %s618 = smul.u32 %s46, 256
        %vm619 = vcmask 0
        %620 = vst.msk [vmem:[%s610] sm:$0x1] %vm619, 0.0
        %621 = vst.msk [vmem:[%s616] sm:$0x1] %vm619, 0.0
        %p622 = scmp.lt.s32.totalorder %s618, %s617
        // Predicated region
        $region73: #{tpu_custom_call.1} parent=47 // pred_check
          %p623 = pneg %p622
        $region74: #{tpu_custom_call.1} parent=47 // pred_check_branch
          %625 = sbr.rel (%p623) target = $region76
        $region75: #{tpu_custom_call.1} parent=47 // pred_region
          %v626 = vld [vmem:[%s517] sm:$0xff]
          %v627 = vld [vmem:[%s517 + $0x8] sm:$0xff]
          %v628 = vld [vmem:[%s467] sm:$0x3]
          %v629 = vld [vmem:[%s477] sm:$0x3]
          %v630 = vld [vmem:[%s487] sm:$0x3]
          %v631 = vld [vmem:[%s497] sm:$0x3]
          %v632 = vld [vmem:[%s602] sm:$0x3]
          %v633 = vld [vmem:[%s507] sm:$0x3]
          %v634 = vlaneseq
          %v635 = vshrl.u32 %v634, 7
          %v636 = vadd.s32 %v635, 8
          %v637 = vperm.slane %v628, 0
          %v638 = vperm.slane %v628, 1
          %vm639 = vcmp.eq.s32.totalorder %v635, %v637
          %vm640 = vcmp.eq.s32.totalorder %v635, %v638
          %vm641 = vcmp.eq.s32.totalorder %v636, %v637
          %vm642 = vcmp.eq.s32.totalorder %v636, %v638
          %v643 = vsel %vm639, 1, 0
          %v644 = vsel %vm640, 1, 0
          %v645 = vsel %vm641, 1, 0
          %v646 = vsel %vm642, 1, 0
          %v647 = vcvt.s32.f32 %v643
          %v648 = vcvt.s32.f32 %v644
          %v649 = vcvt.s32.f32 %v645
          %v650 = vcvt.s32.f32 %v646
          %vm651 = vcmask 130048
          %v653 = vsel %vm651, %v626, 0
          %v656 = vsel %vm651, %v627, 0
          %658 = vmatpush.msra.mxu0 0.0
          %659 = vmatpush.msra.mxu0 0.0
          %660 = vmatpush.msra.mxu0 0.0
          %661 = vmatpush.msra.mxu0 0.0
          %662 = vmatpush.msra.mxu0 0.0
          %663 = vmatpush.msra.mxu0 0.0
          %664 = vmatpush.msra.mxu0 0.0
          %665 = vmatpush.msra.mxu0 0.0
          %666 = vmatpush.msra.mxu0 0.0
          %667 = vmatpush.msra.mxu0 0.0
          %668 = vmatpush.msra.mxu0 0.0
          %669 = vmatpush.msra.mxu0 0.0
          %670 = vmatpush.msra.mxu0 0.0
          %671 = vmatpush.msra.mxu0 0.0
          %672 = vmatpush.msra.mxu0 %v649
          %673 = vmatpush.msra.mxu0 %v647
          %674 = vmatmul.f32.gmra.mxu0 %v653
          %v675 = vpop.f32.mrf.mxu0
          %v676 = vadd.f32 0.0, %v675
          %677 = vmatmul.f32.gmra.mxu0 %v656
          %v678 = vpop.f32.mrf.mxu0
          %v679 = vadd.f32 0.0, %v678
          %680 = vdwg.mxu0
          %681 = vmatpush.msra.mxu0 0.0
          %682 = vmatpush.msra.mxu0 0.0
          %683 = vmatpush.msra.mxu0 0.0
          %684 = vmatpush.msra.mxu0 0.0
          %685 = vmatpush.msra.mxu0 0.0
          %686 = vmatpush.msra.mxu0 0.0
          %687 = vmatpush.msra.mxu0 0.0
          %688 = vmatpush.msra.mxu0 0.0
          %689 = vmatpush.msra.mxu0 0.0
          %690 = vmatpush.msra.mxu0 0.0
          %691 = vmatpush.msra.mxu0 0.0
          %692 = vmatpush.msra.mxu0 0.0
          %693 = vmatpush.msra.mxu0 0.0
          %694 = vmatpush.msra.mxu0 0.0
          %695 = vmatpush.msra.mxu0 %v650
          %696 = vmatpush.msra.mxu0 %v648
          %697 = vmatmul.f32.gmra.mxu0 %v653
          %v698 = vpop.f32.mrf.mxu0
          %v699 = vadd.f32 0.0, %v698
          %700 = vmatmul.f32.gmra.mxu0 %v656
          %v701 = vpop.f32.mrf.mxu0
          %v702 = vadd.f32 0.0, %v701
          %703 = vdwg.mxu0
          %v704 = vperm.slane %v629, 0
          %v705 = vperm.slane %v629, 1
          %vm706 = vcmp.eq.s32.totalorder %v635, %v704
          %vm707 = vcmp.eq.s32.totalorder %v635, %v705
          %vm708 = vcmp.eq.s32.totalorder %v636, %v704
          %vm709 = vcmp.eq.s32.totalorder %v636, %v705
          %v710 = vsel %vm706, %v676, 0.0
          %v711 = vsel %vm707, %v699, 0.0
          %v712 = vsel %vm708, %v679, 0.0
          %v713 = vsel %vm709, %v702, 0.0
          %v714 = vadd.f32 %v710, %v712
          %v715 = vrot.slane %v714, 4
          %v716 = vadd.f32 %v714, %v715
          %v717 = vrot.slane %v716, 2
          %v718 = vadd.f32 %v716, %v717
          %v719 = vrot.slane %v718, 1
          %v720 = vadd.f32 %v718, %v719
          %v721 = vadd.f32 %v711, %v713
          %v722 = vrot.slane %v721, 4
          %v723 = vadd.f32 %v721, %v722
          %v724 = vrot.slane %v723, 2
          %v725 = vadd.f32 %v723, %v724
          %v726 = vrot.slane %v725, 1
          %v727 = vadd.f32 %v725, %v726
          %v728 = vperm.slane %v630, 0
          %v729 = vperm.slane %v630, 1
          %vm730 = vcmp.eq.s32.totalorder %v635, %v728
          %vm731 = vcmp.eq.s32.totalorder %v635, %v729
          %vm732 = vcmp.eq.s32.totalorder %v636, %v728
          %vm733 = vcmp.eq.s32.totalorder %v636, %v729
          %v734 = vsel %vm730, 1, 0
          %v735 = vsel %vm731, 1, 0
          %v736 = vsel %vm732, 1, 0
          %v737 = vsel %vm733, 1, 0
          %v738 = vcvt.s32.f32 %v734
          %v739 = vcvt.s32.f32 %v735
          %v740 = vcvt.s32.f32 %v736
          %v741 = vcvt.s32.f32 %v737
          %742 = vmatpush.msra.mxu0 0.0
          %743 = vmatpush.msra.mxu0 0.0
          %744 = vmatpush.msra.mxu0 0.0
          %745 = vmatpush.msra.mxu0 0.0
          %746 = vmatpush.msra.mxu0 0.0
          %747 = vmatpush.msra.mxu0 0.0
          %748 = vmatpush.msra.mxu0 0.0
          %749 = vmatpush.msra.mxu0 0.0
          %750 = vmatpush.msra.mxu0 0.0
          %751 = vmatpush.msra.mxu0 0.0
          %752 = vmatpush.msra.mxu0 0.0
          %753 = vmatpush.msra.mxu0 0.0
          %754 = vmatpush.msra.mxu0 0.0
          %755 = vmatpush.msra.mxu0 0.0
          %756 = vmatpush.msra.mxu0 %v740
          %757 = vmatpush.msra.mxu0 %v738
          %758 = vmatmul.f32.gmra.mxu0 %v653
          %v759 = vpop.f32.mrf.mxu0
          %v760 = vadd.f32 0.0, %v759
          %761 = vmatmul.f32.gmra.mxu0 %v656
          %v762 = vpop.f32.mrf.mxu0
          %v763 = vadd.f32 0.0, %v762
          %764 = vdwg.mxu0
          %765 = vmatpush.msra.mxu0 0.0
          %766 = vmatpush.msra.mxu0 0.0
          %767 = vmatpush.msra.mxu0 0.0
          %768 = vmatpush.msra.mxu0 0.0
          %769 = vmatpush.msra.mxu0 0.0
          %770 = vmatpush.msra.mxu0 0.0
          %771 = vmatpush.msra.mxu0 0.0
          %772 = vmatpush.msra.mxu0 0.0
          %773 = vmatpush.msra.mxu0 0.0
          %774 = vmatpush.msra.mxu0 0.0
          %775 = vmatpush.msra.mxu0 0.0
          %776 = vmatpush.msra.mxu0 0.0
          %777 = vmatpush.msra.mxu0 0.0
          %778 = vmatpush.msra.mxu0 0.0
          %779 = vmatpush.msra.mxu0 %v741
          %780 = vmatpush.msra.mxu0 %v739
          %781 = vmatmul.f32.gmra.mxu0 %v653
          %v782 = vpop.f32.mrf.mxu0
          %v783 = vadd.f32 0.0, %v782
          %784 = vmatmul.f32.gmra.mxu0 %v656
          %v785 = vpop.f32.mrf.mxu0
          %v786 = vadd.f32 0.0, %v785
          %787 = vdwg.mxu0
          %v788 = vperm.slane %v631, 0
          %v789 = vperm.slane %v631, 1
          %vm790 = vcmp.eq.s32.totalorder %v635, %v788
          %vm791 = vcmp.eq.s32.totalorder %v635, %v789
          %vm792 = vcmp.eq.s32.totalorder %v636, %v788
          %vm793 = vcmp.eq.s32.totalorder %v636, %v789
          %v794 = vsel %vm790, %v760, 0.0
          %v795 = vsel %vm791, %v783, 0.0
          %v796 = vsel %vm792, %v763, 0.0
          %v797 = vsel %vm793, %v786, 0.0
          %v798 = vadd.f32 %v794, %v796
          %v799 = vrot.slane %v798, 4
          %v800 = vadd.f32 %v798, %v799
          %v801 = vrot.slane %v800, 2
          %v802 = vadd.f32 %v800, %v801
          %v803 = vrot.slane %v802, 1
          %v804 = vadd.f32 %v802, %v803
          %v805 = vadd.f32 %v795, %v797
          %v806 = vrot.slane %v805, 4
          %v807 = vadd.f32 %v805, %v806
          %v808 = vrot.slane %v807, 2
          %v809 = vadd.f32 %v807, %v808
          %v810 = vrot.slane %v809, 1
          %v811 = vadd.f32 %v809, %v810
          %v812 = vadd.f32 %v720, 1e-10
          %v813 = vadd.f32 %v727, 1e-10
          %v814 = vrcp.pop %v812
          %v815 = vmul.f32 %v812, %v814
          %v816 = vsub.f32 1.0, %v815
          %v817 = vmul.f32 %v814, %v816
          %v818 = vadd.f32 %v814, %v817
          %vm819 = vweird.f32 %v812
          %vm820 = vweird.f32 %v814
          %vm821 = vmor %vm819, %vm820
          %v822 = vsel %vm821, %v814, %v818
          %v823 = vand.u32 2147483647, %v812
          %vm824 = vcmp.eq.f32.partialorder %v823, 8.507059e+37
          %v825 = vand.u32 %v812, 2147483648
          %v826 = vor.u32 1.1754944e-38, %v825
          %v827 = vsel %vm824, %v826, %v822
          %v828 = vmul.f32 %v804, %v827
          %v829 = vrcp.pop %v813
          %v830 = vmul.f32 %v813, %v829
          %v831 = vsub.f32 1.0, %v830
          %v832 = vmul.f32 %v829, %v831
          %v833 = vadd.f32 %v829, %v832
          %vm834 = vweird.f32 %v813
          %vm835 = vweird.f32 %v829
          %vm836 = vmor %vm834, %vm835
          %v837 = vsel %vm836, %v829, %v833
          %v838 = vand.u32 2147483647, %v813
          %vm839 = vcmp.eq.f32.partialorder %v838, 8.507059e+37
          %v840 = vand.u32 %v813, 2147483648
          %v841 = vor.u32 1.1754944e-38, %v840
          %v842 = vsel %vm839, %v841, %v837
          %v843 = vmul.f32 %v811, %v842
          %vm844 = vcmp.gt.f32.partialorder %v828, 1.1
          %vm845 = vcmp.gt.f32.partialorder %v843, 1.1
          %v846 = vadd.f32 %v804, 1e-10
          %v847 = vadd.f32 %v811, 1e-10
          %v848 = vrcp.pop %v846
          %v849 = vmul.f32 %v846, %v848
          %v850 = vsub.f32 1.0, %v849
          %v851 = vmul.f32 %v848, %v850
          %v852 = vadd.f32 %v848, %v851
          %vm853 = vweird.f32 %v846
          %vm854 = vweird.f32 %v848
          %vm855 = vmor %vm853, %vm854
          %v856 = vsel %vm855, %v848, %v852
          %v857 = vand.u32 2147483647, %v846
          %vm858 = vcmp.eq.f32.partialorder %v857, 8.507059e+37
          %v859 = vand.u32 %v846, 2147483648
          %v860 = vor.u32 1.1754944e-38, %v859
          %v861 = vsel %vm858, %v860, %v856
          %v862 = vmul.f32 %v720, %v861
          %v863 = vrcp.pop %v847
          %v864 = vmul.f32 %v847, %v863
          %v865 = vsub.f32 1.0, %v864
          %v866 = vmul.f32 %v863, %v865
          %v867 = vadd.f32 %v863, %v866
          %vm868 = vweird.f32 %v847
          %vm869 = vweird.f32 %v863
          %vm870 = vmor %vm868, %vm869
          %v871 = vsel %vm870, %v863, %v867
          %v872 = vand.u32 2147483647, %v847
          %vm873 = vcmp.eq.f32.partialorder %v872, 8.507059e+37
          %v874 = vand.u32 %v847, 2147483648
          %v875 = vor.u32 1.1754944e-38, %v874
          %v876 = vsel %vm873, %v875, %v871
          %v877 = vmul.f32 %v727, %v876
          %vm878 = vcmp.gt.f32.partialorder %v862, 1.1
          %vm879 = vcmp.gt.f32.partialorder %v877, 1.1
          %v880 = vsel %vm878, 2, 0
          %v881 = vsel %vm879, 2, 0
          %v882 = vsel %vm844, 1, %v880
          %v883 = vsel %vm845, 1, %v881
          %v884 = vperm.slane %v632, 0
          %v885 = vperm.slane %v632, 1
          %vm886 = vcmp.ne.s32.totalorder %v882, %v884
          %vm887 = vcmp.ne.s32.totalorder %v883, %v885
          %v888 = vsel %vm886, 1, 0
          %v889 = vsel %vm887, 1, 0
          %v890 = vcvt.s32.f32 %v888
          %v891 = vcvt.s32.f32 %v889
          %v892 = vlaneseq
          %v893 = vand.u32 %v892, 127
          %v894 = vadd.s32 %v893, 128
          %v895 = vstv %s618
          %v896 = vadd.s32 %v893, %v895
          %v897 = vadd.s32 %v894, %v895
          %v898 = vstv %s617
          %vm899 = vcmp.lt.s32.totalorder %v896, %v898
          %vm900 = vcmp.lt.s32.totalorder %v897, %v898
          %v901 = vsel %vm899, 1, 0
          %v902 = vsel %vm900, 1, 0
          %v903 = vcvt.s32.f32 %v901
          %v904 = vcvt.s32.f32 %v902
          %v907 = vrot.slane %v904, 7
          %vm908 = vcmask 1040384
          %v909 = vsel %vm908, %v903, %v907
          %v911 = vmul.f32 %v633, %v909
          %v914 = vrot.slane %v891, 7
          %v915 = vsel %vm908, %v890, %v914
          %v917 = vmul.f32 %v911, %v915
          %v919 = vperm.slane %v917, 0
          %v920 = vperm.slane %v917, 1
          %v923 = vsel %vm908, %v919, 0.0
          %v924 = vsel %vm908, %v920, 0.0
          %v925 = vadd.f32 %v923, %v924
          %926 = vadd.xlane.f32.xlu0 %v925
          %v927 = vpop.xlane.xlu0 %926
          %v928 = vrot.slane %v927, 4
          %v929 = vadd.f32 %v927, %v928
          %v930 = vrot.slane %v929, 2
          %v931 = vadd.f32 %v929, %v930
          %v932 = vrot.slane %v931, 1
          %v933 = vadd.f32 %v931, %v932
          %s934 = vtos %v933
          %v935 = vstv %s934
          %936 = vst.msk [vmem:[%s610] sm:$0x1] %vm619, %v935
          %v938 = vperm.slane %v911, 0
          %v939 = vperm.slane %v911, 1
          %v942 = vsel %vm908, %v938, 0.0
          %v943 = vsel %vm908, %v939, 0.0
          %v944 = vadd.f32 %v942, %v943
          %945 = vadd.xlane.f32.xlu0 %v944
          %v946 = vpop.xlane.xlu0 %945
          %v947 = vrot.slane %v946, 4
          %v948 = vadd.f32 %v946, %v947
          %v949 = vrot.slane %v948, 2
          %v950 = vadd.f32 %v948, %v949
          %v951 = vrot.slane %v950, 1
          %v952 = vadd.f32 %v950, %v951
          %s953 = vtos %v952
          %v954 = vstv %s953
          %955 = vst.msk [vmem:[%s616] sm:$0x1] %vm619, %v954
        $region76: #{tpu_custom_call.1} parent=47 // pred_fallthru
          _
        %p956 = scmp.lt.s32.totalorder %s45, 1
        %s957 = scalar_select %p956, %s45, 1
        %p958 = scmp.lt.s32.totalorder %s46, 0
        %s959 = scalar_select %p958, %s46, 0
        %s960 = sadd.s32 %s959, %s957
        %s961 = scalar_lea.vmem %s8, %s960
        %p962 = scmp.lt.s32.totalorder %s45, 1
        %s963 = scalar_select %p962, %s45, 1
        %p964 = scmp.lt.s32.totalorder %s46, 0
        %s965 = scalar_select %p964, %s46, 0
        %s966 = sadd.s32 %s965, %s963
        %s967 = scalar_lea.vmem %s9, %s966
        // Predicated region
        $region77: #{tpu_custom_call.1} parent=47 // pred_check
          %p968 = pneg %p267
        $region78: #{tpu_custom_call.1} parent=47 // pred_check_branch
          %970 = sbr.rel (%p968) target = $region80
        $region79: #{tpu_custom_call.1} parent=47 // pred_region
          _
        $region80: #{tpu_custom_call.1} parent=47 // pred_fallthru
          _
        // Predicated region
        $region81: #{tpu_custom_call.1} parent=47 // pred_check
          %p971 = pneg %p295
        $region82: #{tpu_custom_call.1} parent=47 // pred_check_branch
          %973 = sbr.rel (%p971) target = $region84
        $region83: #{tpu_custom_call.1} parent=47 // pred_region
          _
        $region84: #{tpu_custom_call.1} parent=47 // pred_fallthru
          _
      $region48: #{tpu_custom_call.1} parent=5 // pred_fallthru
        _
      %p974 = scmp.le.s32.totalorder 2, %s36
      // Predicated region
      $region85: #{tpu_custom_call.1} parent=5 // pred_check
        %p975 = pneg %p974
      $region86: #{tpu_custom_call.1} parent=5 // pred_check_branch
        %977 = sbr.rel (%p975) target = $region88
      $region87: #{tpu_custom_call.1} parent=5 // pred_region
        %s978 = ssub.s32 %s36, 2
        // Predicated region
        $region89: #{tpu_custom_call.1} parent=87 // pred_check
          %p979 = pneg %p273
        $region90: #{tpu_custom_call.1} parent=87 // pred_check_branch
          %981 = sbr.rel (%p979) target = $region92
        $region91: #{tpu_custom_call.1} parent=87 // pred_region
          %p982 = scmp.lt.s32.totalorder %s47, 1
          %s983 = scalar_select %p982, %s47, 1
          %p984 = scmp.lt.s32.totalorder %s48, 0
          %s985 = scalar_select %p984, %s48, 0
          %s986 = sadd.s32 %s985, %s983
          %s987 = scalar_lea.vmem %s8, %s986
        $region92: #{tpu_custom_call.1} parent=87 // pred_fallthru
          _
        // Predicated region
        $region93: #{tpu_custom_call.1} parent=87 // pred_check
          %p988 = pneg %p301
        $region94: #{tpu_custom_call.1} parent=87 // pred_check_branch
          %990 = sbr.rel (%p988) target = $region96
        $region95: #{tpu_custom_call.1} parent=87 // pred_region
          %p991 = scmp.lt.s32.totalorder %s47, 1
          %s992 = scalar_select %p991, %s47, 1
          %p993 = scmp.lt.s32.totalorder %s48, 0
          %s994 = scalar_select %p993, %s48, 0
          %s995 = sadd.s32 %s994, %s992
          %s996 = scalar_lea.vmem %s9, %s995
        $region96: #{tpu_custom_call.1} parent=87 // pred_fallthru
          _
      $region88: #{tpu_custom_call.1} parent=5 // pred_fallthru
        _
    $region6: #{tpu_custom_call.1} parent=1 // loop_footer
      %s40 = sadd.s32 1, %s36
    $region7: #{tpu_custom_call.1} parent=1 // loop_footer_branch
      %35 = sbr.rel target = $region3
    $region8: #{tpu_custom_call.1} parent=1 // loop_exit
      _
    %997 = vsyncpa [#allocation5], 1
    %s998 = scalar_lea.sflag [#allocation5], 1
    %999 = vsyncpa %s998, 1
    %1000 = vsyncpa [#allocation7], 1
    %s1001 = scalar_lea.sflag [#allocation7], 1
    %1002 = vsyncpa %s1001, 1
    %1003 = vsyncpa [#allocation10], 1
    %s1004 = scalar_lea.sflag [#allocation10], 1
    %1005 = vsyncpa %s1004, 1
    %1006 = vsyncpa [#allocation13], 1
    %s1007 = scalar_lea.sflag [#allocation13], 1
    %1008 = vsyncpa %s1007, 1

</llo_original>
